<compile_context>
chip_gen: v7x
topology: tpu7x:2x2x1
jax: 0.10.0
libtpu: 0.0.40
codegen_flags: <defaults>
</compile_context>

<pallas_src>
from functools import partial

import jax
import jax.numpy as jnp
from jax.experimental import pallas as pl
from jax.experimental.pallas import tpu as pltpu

LANE = 128  # pad all feature axes to one full lane tile


# --------------------------------------------------------------------------
# Fused kernel: both GIN layers + max-pool readout + final Linear.
# --------------------------------------------------------------------------
def gin_fused_kernel(adj_ref, x_ref, mask_ref, w1_ref, b1_ref, w2_ref, b2_ref,
                     fcw_ref, fcb_ref, o_ref, *, eps, num_layers, batch, nodes):
    a = adj_ref[...]                  # (B, N, N)   per-graph adjacency
    h = x_ref[...]                    # (B*N, LANE) lane-padded node features
    # Lane-broadcast the (BN, 1) mask once, hoisted above the layer loop.
    m = jnp.broadcast_to(mask_ref[...], (batch * nodes, LANE))

    # GIN layers (static unroll; num_layers is small and known at trace time).
    for l in range(num_layers):
        # Per-graph neighbour aggregation: B small (N,N)x(N,LANE) MXU dots —
        # no O((B*N)^2) block-diagonal adjacency materialization.
        neigh = jnp.concatenate(
            [jnp.dot(a[b], h[b * nodes:(b + 1) * nodes, :],
                     preferred_element_type=jnp.float32)
             for b in range(batch)], axis=0)                      # (B*N, LANE)
        z = (1.0 + eps) * h + neigh
        h1 = jnp.dot(z, w1_ref[l], preferred_element_type=jnp.float32) + b1_ref[l]
        h1 = jnp.maximum(h1, 0.0)                                  # ReLU
        h2 = jnp.dot(h1, w2_ref[l], preferred_element_type=jnp.float32) + b2_ref[l]
        h = h2 * m                                                 # zero padded nodes

    # Readout: per-graph max over nodes via static (8,128)-aligned row slices,
    # then the final Linear on lane-padded weights.
    pooled = jnp.concatenate(
        [jnp.max(h[b * nodes:(b + 1) * nodes, :], axis=0, keepdims=True)
         for b in range(batch)], axis=0)                           # (B, LANE)
    o_ref[...] = jnp.dot(pooled, fcw_ref[...],
                         preferred_element_type=jnp.float32) + fcb_ref[...]


# --------------------------------------------------------------------------
# One-time parameter preparation (hoisted out of the per-call path).
# --------------------------------------------------------------------------
def _pad2(a, rows, cols):
    return jnp.pad(a, ((0, rows - a.shape[0]), (0, cols - a.shape[1])))


def pad_gin_params(params):
    """Lane-pad + stack all weights ONCE.

    Zero padding is exact: padded weight rows/cols and bias lanes stay
    identically zero through both layers, the mask multiply, the max, and the
    final FC, so slicing [:, :out_dim] at the end is exact.
    """
    w1s = jnp.stack([_pad2(w1, LANE, LANE) for (w1, _, _, _) in params["layers"]])
    b1s = jnp.stack([_pad2(b1, 1, LANE) for (_, b1, _, _) in params["layers"]])
    w2s = jnp.stack([_pad2(w2, LANE, LANE) for (_, _, w2, _) in params["layers"]])
    b2s = jnp.stack([_pad2(b2, 1, LANE) for (_, _, _, b2) in params["layers"]])
    fcw = _pad2(params["fc_w"], LANE, LANE)
    fcb = _pad2(params["fc_b"], 1, LANE)

    # Guard the zero-padding invariant the kernel relies on.
    out_dim = params["fc_w"].shape[1]
    h_last = params["fc_w"].shape[0]
    assert bool(jnp.all(fcw[h_last:, :] == 0.0))
    assert bool(jnp.all(fcw[:, out_dim:] == 0.0))
    assert bool(jnp.all(fcb[:, out_dim:] == 0.0))

    return {"w1s": w1s, "b1s": b1s, "w2s": w2s, "b2s": b2s,
            "fcw": fcw, "fcb": fcb}


# --------------------------------------------------------------------------
# Forward wrapper: per-call work is only the (tiny) feature lane-padding.
# --------------------------------------------------------------------------
def gin_forward(adj, feats, mask, padded, *, out_dim, eps=0.0):
    B, N, Fin = feats.shape
    BN = B * N
    L = padded["w1s"].shape[0]

    x0 = _pad2(feats.reshape(BN, Fin).astype(jnp.float32), BN, LANE)
    m = mask.reshape(BN, 1).astype(jnp.float32)
    a = adj.astype(jnp.float32)

    out_padded = pl.pallas_call(
        partial(gin_fused_kernel, eps=eps, num_layers=L, batch=B, nodes=N),
        out_shape=jax.ShapeDtypeStruct((B, LANE), jnp.float32),
        # No grid: whole fused network is VMEM-resident at these sizes.
        in_specs=[pl.BlockSpec(memory_space=pltpu.MemorySpace.VMEM)] * 9,
        out_specs=pl.BlockSpec(memory_space=pltpu.MemorySpace.VMEM),
    )(a, x0, m, padded["w1s"], padded["b1s"], padded["w2s"], padded["b2s"],
      padded["fcw"], padded["fcb"])

    # Drop the lane padding of the final Linear output.
    return out_padded[:, :out_dim]


# --------------------------------------------------------------------------
# Pure-JAX reference (unpadded) for correctness check.
# --------------------------------------------------------------------------
def gin_reference(adj, feats, mask, params, eps=0.0):
    B, N, _ = feats.shape
    m = mask.reshape(B, N, 1).astype(jnp.float32)
    x = feats
    for (w1, b1, w2, b2) in params["layers"]:
        neigh = jnp.einsum("bij,bjf->bif", adj, x)
        z = (1.0 + eps) * x + neigh
        h1 = jnp.maximum(jnp.einsum("bnf,fh->bnh", z, w1) + b1, 0.0)
        h2 = jnp.einsum("bnh,hk->bnk", h1, w2) + b2
        x = h2 * m
    pooled = jnp.max(x, axis=1)
    return pooled @ params["fc_w"] + params["fc_b"]


# --------------------------------------------------------------------------
# Deterministic parameter init (synthetic, no checkpoint load).
# --------------------------------------------------------------------------
def init_params(key, in_dim, hidden_dim, out_dim):
    dims = [in_dim] + hidden_dim
    layers = []
    for i in range(len(hidden_dim)):
        fi, fo = dims[i], dims[i + 1]
        key, k1, k2, k3, k4 = jax.random.split(key, 5)
        w1 = jax.random.normal(k1, (fi, fo), jnp.float32) * 0.1
        b1 = jax.random.normal(k2, (1, fo), jnp.float32) * 0.1
        w2 = jax.random.normal(k3, (fo, fo), jnp.float32) * 0.1
        b2 = jax.random.normal(k4, (1, fo), jnp.float32) * 0.1
        layers.append((w1, b1, w2, b2))
    key, k1, k2 = jax.random.split(key, 3)
    fc_w = jax.random.normal(k1, (hidden_dim[-1], out_dim), jnp.float32) * 0.1
    fc_b = jax.random.normal(k2, (1, out_dim), jnp.float32) * 0.1
    return {"layers": layers, "fc_w": fc_w, "fc_b": fc_b}


if __name__ == "__main__":
    B, N, F_in = 2, 16, 8
    hidden_dim = [64, 32]
    out_dim = 4

    key = jax.random.PRNGKey(0)
    key, kf, ka, km = jax.random.split(key, 4)

    feats = jax.random.normal(kf, (B, N, F_in), jnp.float32)             # data[0]
    adj = jax.random.bernoulli(ka, 0.3, (B, N, N)).astype(jnp.float32)   # data[1]
    mask = jax.random.bernoulli(km, 0.8, (B, N)).astype(jnp.float32)     # data[2]

    params = init_params(key, F_in, hidden_dim, out_dim)
    padded = pad_gin_params(params)          # one-time, outside the call path

    fwd = jax.jit(gin_forward, static_argnames=("out_dim", "eps"))
    out = fwd(adj, feats, mask, padded, out_dim=out_dim)
    out = jax.block_until_ready(out)

    ref = gin_reference(adj, feats, mask, params)
    assert out.shape == (B, out_dim), out.shape
    assert jnp.allclose(out, ref, atol=1e-4, rtol=1e-4), (out, ref)

    # TODO(synk): DGL batched-graph construction (numpy_to_graph + dgl.batch) is
    # modeled as dense per-graph adjacencies; learn_eps / dropout are
    # inference-time constants here.

    print("KERNEL_OK")
</pallas_src>

<mosaic_0001>
module attributes {stable_mosaic.version = 11 : i64} {
  func.func @gin_fused_kernel(%arg0: memref<2x16x16xf32, #tpu.memory_space<vmem>>, %arg1: memref<32x128xf32, #tpu.memory_space<vmem>>, %arg2: memref<32x1xf32, #tpu.memory_space<vmem>>, %arg3: memref<2x128x128xf32, #tpu.memory_space<vmem>>, %arg4: memref<2x1x128xf32, #tpu.memory_space<vmem>>, %arg5: memref<2x128x128xf32, #tpu.memory_space<vmem>>, %arg6: memref<2x1x128xf32, #tpu.memory_space<vmem>>, %arg7: memref<128x128xf32, #tpu.memory_space<vmem>>, %arg8: memref<1x128xf32, #tpu.memory_space<vmem>>, %arg9: memref<2x128xf32, #tpu.memory_space<vmem>>) attributes {dimension_semantics = [], scalar_prefetch = 0 : i64, scratch_operands = 0 : i64, tpu.core_type = #tpu.core_type<tc>} {
    %c0 = arith.constant 0 : index
    %c0_0 = arith.constant 0 : index
    %c0_1 = arith.constant 0 : index
    %0 = vector.load %arg0[%c0, %c0_0, %c0_1] : memref<2x16x16xf32, #tpu.memory_space<vmem>>, vector<2x16x16xf32>
    %c0_2 = arith.constant 0 : index
    %c0_3 = arith.constant 0 : index
    %1 = vector.load %arg1[%c0_2, %c0_3] : memref<32x128xf32, #tpu.memory_space<vmem>>, vector<32x128xf32>
    %c0_4 = arith.constant 0 : index
    %c0_5 = arith.constant 0 : index
    %2 = vector.load %arg2[%c0_4, %c0_5] : memref<32x1xf32, #tpu.memory_space<vmem>>, vector<32x1xf32>
    %3 = vector.shape_cast %2 : vector<32x1xf32> to vector<32x1xf32>
    %4 = vector.broadcast %3 : vector<32x1xf32> to vector<32x128xf32>
    %5 = vector.extract_strided_slice %0 {offsets = [0, 0, 0], sizes = [1, 16, 16], strides = [1, 1, 1]} : vector<2x16x16xf32> to vector<1x16x16xf32>
    %6 = vector.shape_cast %5 : vector<1x16x16xf32> to vector<16x16xf32>
    %7 = vector.extract_strided_slice %1 {offsets = [0, 0], sizes = [16, 128], strides = [1, 1]} : vector<32x128xf32> to vector<16x128xf32>
    %cst = arith.constant dense<0.000000e+00> : vector<16x128xf32>
    %8 = tpu.matmul %6, %7, %cst {dimension_numbers = #tpu.dot_dimension_numbers<[1], [0], [0], [1], [0, 0, 1, 1], [], []>} : vector<16x16xf32>, vector<16x128xf32>, vector<16x128xf32> -> vector<16x128xf32>
    %9 = vector.extract_strided_slice %0 {offsets = [1, 0, 0], sizes = [1, 16, 16], strides = [1, 1, 1]} : vector<2x16x16xf32> to vector<1x16x16xf32>
    %10 = vector.shape_cast %9 : vector<1x16x16xf32> to vector<16x16xf32>
    %11 = vector.extract_strided_slice %1 {offsets = [16, 0], sizes = [16, 128], strides = [1, 1]} : vector<32x128xf32> to vector<16x128xf32>
    %cst_6 = arith.constant dense<0.000000e+00> : vector<16x128xf32>
    %12 = tpu.matmul %10, %11, %cst_6 {dimension_numbers = #tpu.dot_dimension_numbers<[1], [0], [0], [1], [0, 0, 1, 1], [], []>} : vector<16x16xf32>, vector<16x128xf32>, vector<16x128xf32> -> vector<16x128xf32>
    %13 = tpu.concatenate %8, %12 in 0 : vector<16x128xf32>, vector<16x128xf32> -> vector<32x128xf32>
    %cst_7 = arith.constant 1.000000e+00 : f32
    %14 = vector.broadcast %cst_7 : f32 to vector<32x128xf32>
    %15 = arith.mulf %14, %1 : vector<32x128xf32>
    %16 = arith.addf %15, %13 : vector<32x128xf32>
    %c0_8 = arith.constant 0 : index
    %c0_9 = arith.constant 0 : index
    %c0_10 = arith.constant 0 : index
    %17 = vector.load %arg3[%c0_8, %c0_9, %c0_10] : memref<2x128x128xf32, #tpu.memory_space<vmem>>, vector<1x128x128xf32>
    %18 = vector.shape_cast %17 : vector<1x128x128xf32> to vector<128x128xf32>
    %cst_11 = arith.constant dense<0.000000e+00> : vector<32x128xf32>
    %19 = tpu.matmul %16, %18, %cst_11 {dimension_numbers = #tpu.dot_dimension_numbers<[1], [0], [0], [1], [0, 0, 1, 1], [], []>} : vector<32x128xf32>, vector<128x128xf32>, vector<32x128xf32> -> vector<32x128xf32>
    %c0_12 = arith.constant 0 : index
    %c0_13 = arith.constant 0 : index
    %c0_14 = arith.constant 0 : index
    %20 = vector.load %arg4[%c0_12, %c0_13, %c0_14] : memref<2x1x128xf32, #tpu.memory_space<vmem>>, vector<1x1x128xf32>
    %21 = vector.shape_cast %20 : vector<1x1x128xf32> to vector<1x128xf32>
    %22 = vector.broadcast %21 : vector<1x128xf32> to vector<32x128xf32>
    %23 = arith.addf %19, %22 : vector<32x128xf32>
    %cst_15 = arith.constant 0.000000e+00 : f32
    %24 = vector.broadcast %cst_15 : f32 to vector<32x128xf32>
    %25 = arith.maximumf %23, %24 : vector<32x128xf32>
    %c0_16 = arith.constant 0 : index
    %c0_17 = arith.constant 0 : index
    %c0_18 = arith.constant 0 : index
    %26 = vector.load %arg5[%c0_16, %c0_17, %c0_18] : memref<2x128x128xf32, #tpu.memory_space<vmem>>, vector<1x128x128xf32>
    %27 = vector.shape_cast %26 : vector<1x128x128xf32> to vector<128x128xf32>
    %cst_19 = arith.constant dense<0.000000e+00> : vector<32x128xf32>
    %28 = tpu.matmul %25, %27, %cst_19 {dimension_numbers = #tpu.dot_dimension_numbers<[1], [0], [0], [1], [0, 0, 1, 1], [], []>} : vector<32x128xf32>, vector<128x128xf32>, vector<32x128xf32> -> vector<32x128xf32>
    %c0_20 = arith.constant 0 : index
    %c0_21 = arith.constant 0 : index
    %c0_22 = arith.constant 0 : index
    %29 = vector.load %arg6[%c0_20, %c0_21, %c0_22] : memref<2x1x128xf32, #tpu.memory_space<vmem>>, vector<1x1x128xf32>
    %30 = vector.shape_cast %29 : vector<1x1x128xf32> to vector<1x128xf32>
    %31 = vector.broadcast %30 : vector<1x128xf32> to vector<32x128xf32>
    %32 = arith.addf %28, %31 : vector<32x128xf32>
    %33 = arith.mulf %32, %4 : vector<32x128xf32>
    %34 = vector.extract_strided_slice %0 {offsets = [0, 0, 0], sizes = [1, 16, 16], strides = [1, 1, 1]} : vector<2x16x16xf32> to vector<1x16x16xf32>
    %35 = vector.shape_cast %34 : vector<1x16x16xf32> to vector<16x16xf32>
    %36 = vector.extract_strided_slice %33 {offsets = [0, 0], sizes = [16, 128], strides = [1, 1]} : vector<32x128xf32> to vector<16x128xf32>
    %cst_23 = arith.constant dense<0.000000e+00> : vector<16x128xf32>
    %37 = tpu.matmul %35, %36, %cst_23 {dimension_numbers = #tpu.dot_dimension_numbers<[1], [0], [0], [1], [0, 0, 1, 1], [], []>} : vector<16x16xf32>, vector<16x128xf32>, vector<16x128xf32> -> vector<16x128xf32>
    %38 = vector.extract_strided_slice %0 {offsets = [1, 0, 0], sizes = [1, 16, 16], strides = [1, 1, 1]} : vector<2x16x16xf32> to vector<1x16x16xf32>
    %39 = vector.shape_cast %38 : vector<1x16x16xf32> to vector<16x16xf32>
    %40 = vector.extract_strided_slice %33 {offsets = [16, 0], sizes = [16, 128], strides = [1, 1]} : vector<32x128xf32> to vector<16x128xf32>
    %cst_24 = arith.constant dense<0.000000e+00> : vector<16x128xf32>
    %41 = tpu.matmul %39, %40, %cst_24 {dimension_numbers = #tpu.dot_dimension_numbers<[1], [0], [0], [1], [0, 0, 1, 1], [], []>} : vector<16x16xf32>, vector<16x128xf32>, vector<16x128xf32> -> vector<16x128xf32>
    %42 = tpu.concatenate %37, %41 in 0 : vector<16x128xf32>, vector<16x128xf32> -> vector<32x128xf32>
    %cst_25 = arith.constant 1.000000e+00 : f32
    %43 = vector.broadcast %cst_25 : f32 to vector<32x128xf32>
    %44 = arith.mulf %43, %33 : vector<32x128xf32>
    %45 = arith.addf %44, %42 : vector<32x128xf32>
    %c1 = arith.constant 1 : index
    %c0_26 = arith.constant 0 : index
    %c0_27 = arith.constant 0 : index
    %46 = vector.load %arg3[%c1, %c0_26, %c0_27] : memref<2x128x128xf32, #tpu.memory_space<vmem>>, vector<1x128x128xf32>
    %47 = vector.shape_cast %46 : vector<1x128x128xf32> to vector<128x128xf32>
    %cst_28 = arith.constant dense<0.000000e+00> : vector<32x128xf32>
    %48 = tpu.matmul %45, %47, %cst_28 {dimension_numbers = #tpu.dot_dimension_numbers<[1], [0], [0], [1], [0, 0, 1, 1], [], []>} : vector<32x128xf32>, vector<128x128xf32>, vector<32x128xf32> -> vector<32x128xf32>
    %c1_29 = arith.constant 1 : index
    %c0_30 = arith.constant 0 : index
    %c0_31 = arith.constant 0 : index
    %49 = vector.load %arg4[%c1_29, %c0_30, %c0_31] : memref<2x1x128xf32, #tpu.memory_space<vmem>>, vector<1x1x128xf32>
    %50 = vector.shape_cast %49 : vector<1x1x128xf32> to vector<1x128xf32>
    %51 = vector.broadcast %50 : vector<1x128xf32> to vector<32x128xf32>
    %52 = arith.addf %48, %51 : vector<32x128xf32>
    %cst_32 = arith.constant 0.000000e+00 : f32
    %53 = vector.broadcast %cst_32 : f32 to vector<32x128xf32>
    %54 = arith.maximumf %52, %53 : vector<32x128xf32>
    %c1_33 = arith.constant 1 : index
    %c0_34 = arith.constant 0 : index
    %c0_35 = arith.constant 0 : index
    %55 = vector.load %arg5[%c1_33, %c0_34, %c0_35] : memref<2x128x128xf32, #tpu.memory_space<vmem>>, vector<1x128x128xf32>
    %56 = vector.shape_cast %55 : vector<1x128x128xf32> to vector<128x128xf32>
    %cst_36 = arith.constant dense<0.000000e+00> : vector<32x128xf32>
    %57 = tpu.matmul %54, %56, %cst_36 {dimension_numbers = #tpu.dot_dimension_numbers<[1], [0], [0], [1], [0, 0, 1, 1], [], []>} : vector<32x128xf32>, vector<128x128xf32>, vector<32x128xf32> -> vector<32x128xf32>
    %c1_37 = arith.constant 1 : index
    %c0_38 = arith.constant 0 : index
    %c0_39 = arith.constant 0 : index
    %58 = vector.load %arg6[%c1_37, %c0_38, %c0_39] : memref<2x1x128xf32, #tpu.memory_space<vmem>>, vector<1x1x128xf32>
    %59 = vector.shape_cast %58 : vector<1x1x128xf32> to vector<1x128xf32>
    %60 = vector.broadcast %59 : vector<1x128xf32> to vector<32x128xf32>
    %61 = arith.addf %57, %60 : vector<32x128xf32>
    %62 = arith.mulf %61, %4 : vector<32x128xf32>
    %63 = vector.extract_strided_slice %62 {offsets = [0, 0], sizes = [16, 128], strides = [1, 1]} : vector<32x128xf32> to vector<16x128xf32>
    %cst_40 = arith.constant dense<0xFF800000> : vector<128xf32>
    %64 = vector.multi_reduction <maximumf>, %63, %cst_40 [0] : vector<16x128xf32> to vector<128xf32>
    %65 = vector.shape_cast %64 : vector<128xf32> to vector<1x128xf32>
    %66 = vector.extract_strided_slice %62 {offsets = [16, 0], sizes = [16, 128], strides = [1, 1]} : vector<32x128xf32> to vector<16x128xf32>
    %cst_41 = arith.constant dense<0xFF800000> : vector<128xf32>
    %67 = vector.multi_reduction <maximumf>, %66, %cst_41 [0] : vector<16x128xf32> to vector<128xf32>
    %68 = vector.shape_cast %67 : vector<128xf32> to vector<1x128xf32>
    %69 = tpu.concatenate %65, %68 in 0 : vector<1x128xf32>, vector<1x128xf32> -> vector<2x128xf32>
    %c0_42 = arith.constant 0 : index
    %c0_43 = arith.constant 0 : index
    %70 = vector.load %arg7[%c0_42, %c0_43] : memref<128x128xf32, #tpu.memory_space<vmem>>, vector<128x128xf32>
    %cst_44 = arith.constant dense<0.000000e+00> : vector<2x128xf32>
    %71 = tpu.matmul %69, %70, %cst_44 {dimension_numbers = #tpu.dot_dimension_numbers<[1], [0], [0], [1], [0, 0, 1, 1], [], []>} : vector<2x128xf32>, vector<128x128xf32>, vector<2x128xf32> -> vector<2x128xf32>
    %c0_45 = arith.constant 0 : index
    %c0_46 = arith.constant 0 : index
    %72 = vector.load %arg8[%c0_45, %c0_46] : memref<1x128xf32, #tpu.memory_space<vmem>>, vector<1x128xf32>
    %73 = vector.broadcast %72 : vector<1x128xf32> to vector<2x128xf32>
    %74 = arith.addf %71, %73 : vector<2x128xf32>
    %c0_47 = arith.constant 0 : index
    %c0_48 = arith.constant 0 : index
    %75 = vector.load %arg9[%c0_47, %c0_48] : memref<2x128xf32, #tpu.memory_space<vmem>>, vector<2x128xf32>
    tpu.vector_store %arg9[%c0_47, %c0_48], %74 {strides = array<i32>} : memref<2x128xf32, #tpu.memory_space<vmem>>, vector<2x128xf32>,
    return
  }
}

</mosaic_0001>

<llo_original>
// kernel: gin_forward.1
$region0: #{gin_forward.1}
  #allocation0 [shape = 'u32[]', space=smem, size = 0x4, offset = 0x4, fixed_abs, tag = 'smem constant byte address 0x4 - core index']
  #allocation1 [shape = 'u32[144,128]{1,0:T(1,128)}', space=vmem, size = 0x12000, scoped, tag = 'internal scratch']
  %s0 = inlined_call_operand.vmem [shape: f32[2,16,16], index: 0, kind: input, shape index: {}]
  %s1 = inlined_call_operand.vmem [shape: f32[32,128], index: 1, kind: input, shape index: {}]
  %s2 = inlined_call_operand.vmem [shape: f32[32,1], index: 2, kind: input, shape index: {}]
  %s3 = inlined_call_operand.hbm [shape: f32[2,128,128], index: 3, kind: input, shape index: {}]
  %s4 = inlined_call_operand.vmem [shape: f32[2,1,128], index: 4, kind: input, shape index: {}]
  %s5 = inlined_call_operand.hbm [shape: f32[2,128,128], index: 5, kind: input, shape index: {}]
  %s6 = inlined_call_operand.vmem [shape: f32[2,1,128], index: 6, kind: input, shape index: {}]
  %s7 = inlined_call_operand.vmem [shape: f32[128,128], index: 7, kind: input, shape index: {}]
  %s8 = inlined_call_operand.vmem [shape: f32[1,128], index: 8, kind: input, shape index: {}]
  %s9 = inlined_call_operand.hbm [shape: f32[2,128], index: 9, kind: output, shape index: {}]
  %s10 = sld [smem:[#allocation0]]
  $region54: #{gin_forward.1} parent=0
    _
  %s12 = ssub.s32 1, %s10
  %s13 = scalar_select 0, %s12, %s10
  $region1: #{gin_forward.1} parent=0
    #allocation2 [shape = 'u8[131072]{0}', space=vmem, size = 0x20000, scoped, tag = 'input window, operand 3, single buffered']
    #allocation3 [shape = 's32[1]{0}', space=sflag, size = 0x4, scoped, tag = 'scoped memory for gin_forward.1']
    #allocation4 [shape = 's32[1]{0}', space=sflag, size = 0x4, scoped, tag = 'scoped memory for gin_forward.1']
    #allocation5 [shape = 'u8[131072]{0}', space=vmem, size = 0x20000, scoped, tag = 'input window, operand 5, single buffered']
    #allocation6 [shape = 's32[1]{0}', space=sflag, size = 0x4, scoped, tag = 'scoped memory for gin_forward.1']
    #allocation7 [shape = 'u8[1024]{0}', space=vmem, size = 0x400, scoped, tag = 'output window, operand 0, single buffered']
    %14 = vsyncpa [#allocation3], 0
    %15 = vsyncpa [#allocation6], 0
    %16 = vsyncpa [#allocation4], 0
    // Predicated region
    $region2: #{gin_forward.1} parent=1 // pred_check
      _
    $region3: #{gin_forward.1} parent=1 // pred_check_branch
      %18 = sbr.rel (0) target = $region5
    $region4: #{gin_forward.1} parent=1 // pred_region
      _
    $region5: #{gin_forward.1} parent=1 // pred_fallthru
      _
    // Predicated region
    $region6: #{gin_forward.1} parent=1 // pred_check
      _
    $region7: #{gin_forward.1} parent=1 // pred_check_branch
      %20 = sbr.rel (0) target = $region9
    $region8: #{gin_forward.1} parent=1 // pred_region
      _
    $region9: #{gin_forward.1} parent=1 // pred_fallthru
      _
    // Predicated region
    $region10: #{gin_forward.1} parent=1 // pred_check
      _
    $region11: #{gin_forward.1} parent=1 // pred_check_branch
      %22 = sbr.rel (0) target = $region13
    $region12: #{gin_forward.1} parent=1 // pred_region
      _
    $region13: #{gin_forward.1} parent=1 // pred_fallthru
      _
    // Predicated region
    $region14: #{gin_forward.1} parent=1 // pred_check
      _
    $region15: #{gin_forward.1} parent=1 // pred_check_branch
      %24 = sbr.rel (0) target = $region17
    $region16: #{gin_forward.1} parent=1 // pred_region
      %s26 = ssub.s32 4096, 4096
      %27 = vsyncadd [#allocation3], %s26
      %s28 = sshll.u32 [#allocation2], 4
      %s29 = int_to_ptr.vmem [resolvable:$true] %s28
      %34 = dma.hbm_to_vmem [thread:$0]  %s3, 4096, %s29, [#allocation3], 128, 128, 8
    $region17: #{gin_forward.1} parent=1 // pred_fallthru
      _
    // Predicated region
    $region18: #{gin_forward.1} parent=1 // pred_check
      _
    $region19: #{gin_forward.1} parent=1 // pred_check_branch
      %36 = sbr.rel (0) target = $region21
    $region20: #{gin_forward.1} parent=1 // pred_region
      _
    $region21: #{gin_forward.1} parent=1 // pred_fallthru
      _
    // Predicated region
    $region22: #{gin_forward.1} parent=1 // pred_check
      _
    $region23: #{gin_forward.1} parent=1 // pred_check_branch
      %38 = sbr.rel (0) target = $region25
    $region24: #{gin_forward.1} parent=1 // pred_region
      %s40 = ssub.s32 4096, 4096
      %41 = vsyncadd [#allocation6], %s40
      %s42 = sshll.u32 [#allocation5], 4
      %s43 = int_to_ptr.vmem [resolvable:$true] %s42
      %48 = dma.hbm_to_vmem [thread:$0]  %s5, 4096, %s43, [#allocation6], 128, 128, 8
    $region25: #{gin_forward.1} parent=1 // pred_fallthru
      _
    // Predicated region
    $region26: #{gin_forward.1} parent=1 // pred_check
      _
    $region27: #{gin_forward.1} parent=1 // pred_check_branch
      %50 = sbr.rel (0) target = $region29
    $region28: #{gin_forward.1} parent=1 // pred_region
      _
    $region29: #{gin_forward.1} parent=1 // pred_fallthru
      _
    // Predicated region
    $region30: #{gin_forward.1} parent=1 // pred_check
      _
    $region31: #{gin_forward.1} parent=1 // pred_check_branch
      %52 = sbr.rel (0) target = $region33
    $region32: #{gin_forward.1} parent=1 // pred_region
      _
    $region33: #{gin_forward.1} parent=1 // pred_fallthru
      _
    // Predicated region
    $region34: #{gin_forward.1} parent=1 // pred_check
      _
    $region35: #{gin_forward.1} parent=1 // pred_check_branch
      %54 = sbr.rel (0) target = $region37
    $region36: #{gin_forward.1} parent=1 // pred_region
      _
    $region37: #{gin_forward.1} parent=1 // pred_fallthru
      _
    // Predicated region
    $region38: #{gin_forward.1} parent=1 // pred_check
      _
    $region39: #{gin_forward.1} parent=1 // pred_check_branch
      %56 = sbr.rel (0) target = $region41
    $region40: #{gin_forward.1} parent=1 // pred_region
      %57 = dma.done [#allocation3], 4096
    $region41: #{gin_forward.1} parent=1 // pred_fallthru
      _
    // Predicated region
    $region42: #{gin_forward.1} parent=1 // pred_check
      _
    $region43: #{gin_forward.1} parent=1 // pred_check_branch
      %59 = sbr.rel (0) target = $region45
    $region44: #{gin_forward.1} parent=1 // pred_region
      %60 = dma.done [#allocation6], 4096
    $region45: #{gin_forward.1} parent=1 // pred_fallthru
      _
    %v61 = vld [vmem:[%s0] sm:$0xff]
    %v62 = vld [vmem:[%s0 + $0x8] sm:$0xff]
    %v63 = vld [vmem:[%s0 + $0x10] sm:$0xff]
    %v64 = vld [vmem:[%s0 + $0x18] sm:$0xff]
    %v65 = vld [vmem:[%s1] sm:$0xff]
    %v66 = vld [vmem:[%s1 + $0x8] sm:$0xff]
    %v67 = vld [vmem:[%s1 + $0x10] sm:$0xff]
    %v68 = vld [vmem:[%s1 + $0x18] sm:$0xff]
    %v69 = vld [vmem:[%s2] sm:$0xff]
    %v70 = vld [vmem:[%s2 + $0x8] sm:$0xff]
    %v71 = vld [vmem:[%s2 + $0x10] sm:$0xff]
    %v72 = vld [vmem:[%s2 + $0x18] sm:$0xff]
    %74 = vset.pattern.permute.xlu0 0
    %75 = vperm.xlu0 %74, %v69
    %v76 = vpop.permute.xlu0 %75
    %79 = vset.pattern.permute.xlu0 0
    %80 = vperm.xlu0 %79, %v70
    %v81 = vpop.permute.xlu0 %80
    %84 = vset.pattern.permute.xlu0 0
    %85 = vperm.xlu0 %84, %v71
    %v86 = vpop.permute.xlu0 %85
    %89 = vset.pattern.permute.xlu0 0
    %90 = vperm.xlu0 %89, %v72
    %v91 = vpop.permute.xlu0 %90
    %vm93 = vcmask 130048
    %v95 = vsel %vm93, %v61, 0
    %v98 = vsel %vm93, %v62, 0
    %100 = vmatprep.subr.mxu0 0.0
    %101 = vmatpush1.msra.mxu0 %v65
    %102 = vmatprep.subr.mxu0 0.0
    %103 = vmatpush1.msra.mxu0 %v66
    %104 = vmatprep.subr.mxu0 0.0
    %105 = vmatpush1.msra.mxu0 0.0
    %106 = vmatprep.subr.mxu0 0.0
    %107 = vmatpush1.msra.mxu0 0.0
    %108 = vmatprep.subr.mxu0 0.0
    %109 = vmatpush1.msra.mxu0 0.0
    %110 = vmatprep.subr.mxu0 0.0
    %111 = vmatpush1.msra.mxu0 0.0
    %112 = vmatprep.subr.mxu0 0.0
    %113 = vmatpush1.msra.mxu0 0.0
    %114 = vmatprep.subr.mxu0 0.0
    %115 = vmatpush1.msra.mxu0 0.0
    %116 = vmatprep.subr.mxu0 0.0
    %117 = vmatpush1.msra.mxu0 0.0
    %118 = vmatprep.subr.mxu0 0.0
    %119 = vmatpush1.msra.mxu0 0.0
    %120 = vmatprep.subr.mxu0 0.0
    %121 = vmatpush1.msra.mxu0 0.0
    %122 = vmatprep.subr.mxu0 0.0
    %123 = vmatpush1.msra.mxu0 0.0
    %124 = vmatprep.subr.mxu0 0.0
    %125 = vmatpush1.msra.mxu0 0.0
    %126 = vmatprep.subr.mxu0 0.0
    %127 = vmatpush1.msra.mxu0 0.0
    %128 = vmatprep.subr.mxu0 0.0
    %129 = vmatpush1.msra.mxu0 0.0
    %130 = vmatprep.subr.mxu0 0.0
    %131 = vmatpush1.msra.mxu0 0.0
    %132 = vmatprep.subr.mxu0 0.0
    %133 = vmatpush1.msra.mxu0 0.0
    %134 = vmatprep.subr.mxu0 0.0
    %135 = vmatpush1.msra.mxu0 0.0
    %136 = vmatprep.subr.mxu0 0.0
    %137 = vmatpush1.msra.mxu0 0.0
    %138 = vmatprep.subr.mxu0 0.0
    %139 = vmatpush1.msra.mxu0 0.0
    %140 = vmatprep.subr.mxu0 0.0
    %141 = vmatpush1.msra.mxu0 0.0
    %142 = vmatprep.subr.mxu0 0.0
    %143 = vmatpush1.msra.mxu0 0.0
    %144 = vmatprep.subr.mxu0 0.0
    %145 = vmatpush1.msra.mxu0 0.0
    %146 = vmatprep.subr.mxu0 0.0
    %147 = vmatpush1.msra.mxu0 0.0
    %148 = vmatprep.subr.mxu0 0.0
    %149 = vmatpush1.msra.mxu0 0.0
    %150 = vmatprep.subr.mxu0 0.0
    %151 = vmatpush1.msra.mxu0 0.0
    %152 = vmatprep.subr.mxu0 0.0
    %153 = vmatpush1.msra.mxu0 0.0
    %154 = vmatprep.subr.mxu0 0.0
    %155 = vmatpush1.msra.mxu0 0.0
    %156 = vmatprep.subr.mxu0 0.0
    %157 = vmatpush1.msra.mxu0 0.0
    %158 = vmatprep.subr.mxu0 0.0
    %159 = vmatpush1.msra.mxu0 0.0
    %160 = vmatprep.subr.mxu0 0.0
    %161 = vmatpush1.msra.mxu0 0.0
    %162 = vmatprep.subr.mxu0 0.0
    %163 = vmatpush1.msra.mxu0 0.0
    %164 = vmatprep.mubr.f32.mxu0 0.0
    %165 = vmatmul.mubr.f32.gmra.mrb[0].mxu0 %v95
    %v166 = vpop.f32.mrb[0].mxu0
    %v167 = vadd.f32 0.0, %v166
    %v168 = vpop.f32.mrb[0].mxu0
    %169 = vmatprep.mubr.f32.mxu0 0.0
    %170 = vmatmul.mubr.f32.gmra.mrb[0].mxu0 %v98
    %v171 = vpop.f32.mrb[0].mxu0
    %v172 = vadd.f32 0.0, %v171
    %v173 = vpop.f32.mrb[0].mxu0
    %174 = vdwg.mxu0
    %v176 = vsel %vm93, %v63, 0
    %v179 = vsel %vm93, %v64, 0
    %181 = vmatprep.subr.mxu0 0.0
    %182 = vmatpush1.msra.mxu0 %v67
    %183 = vmatprep.subr.mxu0 0.0
    %184 = vmatpush1.msra.mxu0 %v68
    %185 = vmatprep.subr.mxu0 0.0
    %186 = vmatpush1.msra.mxu0 0.0
    %187 = vmatprep.subr.mxu0 0.0
    %188 = vmatpush1.msra.mxu0 0.0
    %189 = vmatprep.subr.mxu0 0.0
    %190 = vmatpush1.msra.mxu0 0.0
    %191 = vmatprep.subr.mxu0 0.0
    %192 = vmatpush1.msra.mxu0 0.0
    %193 = vmatprep.subr.mxu0 0.0
    %194 = vmatpush1.msra.mxu0 0.0
    %195 = vmatprep.subr.mxu0 0.0
    %196 = vmatpush1.msra.mxu0 0.0
    %197 = vmatprep.subr.mxu0 0.0
    %198 = vmatpush1.msra.mxu0 0.0
    %199 = vmatprep.subr.mxu0 0.0
    %200 = vmatpush1.msra.mxu0 0.0
    %201 = vmatprep.subr.mxu0 0.0
    %202 = vmatpush1.msra.mxu0 0.0
    %203 = vmatprep.subr.mxu0 0.0
    %204 = vmatpush1.msra.mxu0 0.0
    %205 = vmatprep.subr.mxu0 0.0
    %206 = vmatpush1.msra.mxu0 0.0
    %207 = vmatprep.subr.mxu0 0.0
    %208 = vmatpush1.msra.mxu0 0.0
    %209 = vmatprep.subr.mxu0 0.0
    %210 = vmatpush1.msra.mxu0 0.0
    %211 = vmatprep.subr.mxu0 0.0
    %212 = vmatpush1.msra.mxu0 0.0
    %213 = vmatprep.subr.mxu0 0.0
    %214 = vmatpush1.msra.mxu0 0.0
    %215 = vmatprep.subr.mxu0 0.0
    %216 = vmatpush1.msra.mxu0 0.0
    %217 = vmatprep.subr.mxu0 0.0
    %218 = vmatpush1.msra.mxu0 0.0
    %219 = vmatprep.subr.mxu0 0.0
    %220 = vmatpush1.msra.mxu0 0.0
    %221 = vmatprep.subr.mxu0 0.0
    %222 = vmatpush1.msra.mxu0 0.0
    %223 = vmatprep.subr.mxu0 0.0
    %224 = vmatpush1.msra.mxu0 0.0
    %225 = vmatprep.subr.mxu0 0.0
    %226 = vmatpush1.msra.mxu0 0.0
    %227 = vmatprep.subr.mxu0 0.0
    %228 = vmatpush1.msra.mxu0 0.0
    %229 = vmatprep.subr.mxu0 0.0
    %230 = vmatpush1.msra.mxu0 0.0
    %231 = vmatprep.subr.mxu0 0.0
    %232 = vmatpush1.msra.mxu0 0.0
    %233 = vmatprep.subr.mxu0 0.0
    %234 = vmatpush1.msra.mxu0 0.0
    %235 = vmatprep.subr.mxu0 0.0
    %236 = vmatpush1.msra.mxu0 0.0
    %237 = vmatprep.subr.mxu0 0.0
    %238 = vmatpush1.msra.mxu0 0.0
    %239 = vmatprep.subr.mxu0 0.0
    %240 = vmatpush1.msra.mxu0 0.0
    %241 = vmatprep.subr.mxu0 0.0
    %242 = vmatpush1.msra.mxu0 0.0
    %243 = vmatprep.subr.mxu0 0.0
    %244 = vmatpush1.msra.mxu0 0.0
    %245 = vmatprep.mubr.f32.mxu0 0.0
    %246 = vmatmul.mubr.f32.gmra.mrb[0].mxu0 %v176
    %v247 = vpop.f32.mrb[0].mxu0
    %v248 = vadd.f32 0.0, %v247
    %v249 = vpop.f32.mrb[0].mxu0
    %250 = vmatprep.mubr.f32.mxu0 0.0
    %251 = vmatmul.mubr.f32.gmra.mrb[0].mxu0 %v179
    %v252 = vpop.f32.mrb[0].mxu0
    %v253 = vadd.f32 0.0, %v252
    %v254 = vpop.f32.mrb[0].mxu0
    %255 = vdwg.mxu0
    %v256 = vadd.f32 %v65, %v167
    %v257 = vadd.f32 %v66, %v172
    %v258 = vadd.f32 %v67, %v248
    %v259 = vadd.f32 %v68, %v253
    %v260 = vld [vmem:[#allocation2] sm:$0xff]
    %v261 = vld [vmem:[#allocation2 + $0x8] sm:$0xff]
    %v262 = vld [vmem:[#allocation2 + $0x10] sm:$0xff]
    %v263 = vld [vmem:[#allocation2 + $0x18] sm:$0xff]
    %v264 = vld [vmem:[#allocation2 + $0x20] sm:$0xff]
    %v265 = vld [vmem:[#allocation2 + $0x28] sm:$0xff]
    %v266 = vld [vmem:[#allocation2 + $0x30] sm:$0xff]
    %v267 = vld [vmem:[#allocation2 + $0x38] sm:$0xff]
    %v268 = vld [vmem:[#allocation2 + $0x40] sm:$0xff]
    %v269 = vld [vmem:[#allocation2 + $0x48] sm:$0xff]
    %v270 = vld [vmem:[#allocation2 + $0x50] sm:$0xff]
    %v271 = vld [vmem:[#allocation2 + $0x58] sm:$0xff]
    %v272 = vld [vmem:[#allocation2 + $0x60] sm:$0xff]
    %v273 = vld [vmem:[#allocation2 + $0x68] sm:$0xff]
    %v274 = vld [vmem:[#allocation2 + $0x70] sm:$0xff]
    %v275 = vld [vmem:[#allocation2 + $0x78] sm:$0xff]
    %v276 = vld [vmem:[%s4] sm:$0x1]
    %v278 = vlaneseq
    %v279 = vshrl.u32 %v278, 7
    %v280 = vsub.s32 0, %v279
    %v281 = vrot.slane %v276, %v280
    %283 = vmatprep.subr.mxu0 0.0
    %284 = vmatpush1.msra.mxu0 %v260
    %285 = vmatprep.subr.mxu0 0.0
    %286 = vmatpush1.msra.mxu0 %v261
    %287 = vmatprep.subr.mxu0 0.0
    %288 = vmatpush1.msra.mxu0 %v262
    %289 = vmatprep.subr.mxu0 0.0
    %290 = vmatpush1.msra.mxu0 %v263
    %291 = vmatprep.subr.mxu0 0.0
    %292 = vmatpush1.msra.mxu0 %v264
    %293 = vmatprep.subr.mxu0 0.0
    %294 = vmatpush1.msra.mxu0 %v265
    %295 = vmatprep.subr.mxu0 0.0
    %296 = vmatpush1.msra.mxu0 %v266
    %297 = vmatprep.subr.mxu0 0.0
    %298 = vmatpush1.msra.mxu0 %v267
    %299 = vmatprep.subr.mxu0 0.0
    %300 = vmatpush1.msra.mxu0 %v268
    %301 = vmatprep.subr.mxu0 0.0
    %302 = vmatpush1.msra.mxu0 %v269
    %303 = vmatprep.subr.mxu0 0.0
    %304 = vmatpush1.msra.mxu0 %v270
    %305 = vmatprep.subr.mxu0 0.0
    %306 = vmatpush1.msra.mxu0 %v271
    %307 = vmatprep.subr.mxu0 0.0
    %308 = vmatpush1.msra.mxu0 %v272
    %309 = vmatprep.subr.mxu0 0.0
    %310 = vmatpush1.msra.mxu0 %v273
    %311 = vmatprep.subr.mxu0 0.0
    %312 = vmatpush1.msra.mxu0 %v274
    %313 = vmatprep.subr.mxu0 0.0
    %314 = vmatpush1.msra.mxu0 %v275
    %315 = vmatprep.subr.mxu0 0.0
    %316 = vmatpush1.msra.mxu0 0.0
    %317 = vmatprep.subr.mxu0 0.0
    %318 = vmatpush1.msra.mxu0 0.0
    %319 = vmatprep.subr.mxu0 0.0
    %320 = vmatpush1.msra.mxu0 0.0
    %321 = vmatprep.subr.mxu0 0.0
    %322 = vmatpush1.msra.mxu0 0.0
    %323 = vmatprep.subr.mxu0 0.0
    %324 = vmatpush1.msra.mxu0 0.0
    %325 = vmatprep.subr.mxu0 0.0
    %326 = vmatpush1.msra.mxu0 0.0
    %327 = vmatprep.subr.mxu0 0.0
    %328 = vmatpush1.msra.mxu0 0.0
    %329 = vmatprep.subr.mxu0 0.0
    %330 = vmatpush1.msra.mxu0 0.0
    %331 = vmatprep.subr.mxu0 0.0
    %332 = vmatpush1.msra.mxu0 0.0
    %333 = vmatprep.subr.mxu0 0.0
    %334 = vmatpush1.msra.mxu0 0.0
    %335 = vmatprep.subr.mxu0 0.0
    %336 = vmatpush1.msra.mxu0 0.0
    %337 = vmatprep.subr.mxu0 0.0
    %338 = vmatpush1.msra.mxu0 0.0
    %339 = vmatprep.subr.mxu0 0.0
    %340 = vmatpush1.msra.mxu0 0.0
    %341 = vmatprep.subr.mxu0 0.0
    %342 = vmatpush1.msra.mxu0 0.0
    %343 = vmatprep.subr.mxu0 0.0
    %344 = vmatpush1.msra.mxu0 0.0
    %345 = vmatprep.subr.mxu0 0.0
    %346 = vmatpush1.msra.mxu0 0.0
    %347 = vmatprep.mubr.f32.mxu0 0.0
    %348 = vmatmul.mubr.f32.gmra.mrb[0].mxu0 %v256
    %v349 = vpop.f32.mrb[0].mxu0
    %v350 = vadd.f32 %v281, %v349
    %v351 = vpop.f32.mrb[0].mxu0
    %352 = vmatprep.mubr.f32.mxu0 0.0
    %353 = vmatmul.mubr.f32.gmra.mrb[0].mxu0 %v257
    %v354 = vpop.f32.mrb[0].mxu0
    %v355 = vadd.f32 %v281, %v354
    %v356 = vpop.f32.mrb[0].mxu0
    %357 = vmatprep.mubr.f32.mxu0 0.0
    %358 = vmatmul.mubr.f32.gmra.mrb[0].mxu0 %v258
    %v359 = vpop.f32.mrb[0].mxu0
    %v360 = vadd.f32 %v281, %v359
    %v361 = vpop.f32.mrb[0].mxu0
    %362 = vmatprep.mubr.f32.mxu0 0.0
    %363 = vmatmul.mubr.f32.gmra.mrb[0].mxu0 %v259
    %v364 = vpop.f32.mrb[0].mxu0
    %v365 = vadd.f32 %v281, %v364
    %v366 = vpop.f32.mrb[0].mxu0
    %367 = vdwg.mxu0
    %v368 = vmax.f32 %v350, 0.0
    %v369 = vmax.f32 %v355, 0.0
    %v370 = vmax.f32 %v360, 0.0
    %v371 = vmax.f32 %v365, 0.0
    %v372 = vld [vmem:[#allocation5] sm:$0xff]
    %v373 = vld [vmem:[#allocation5 + $0x8] sm:$0xff]
    %v374 = vld [vmem:[#allocation5 + $0x10] sm:$0xff]
    %v375 = vld [vmem:[#allocation5 + $0x18] sm:$0xff]
    %v376 = vld [vmem:[#allocation5 + $0x20] sm:$0xff]
    %v377 = vld [vmem:[#allocation5 + $0x28] sm:$0xff]
    %v378 = vld [vmem:[#allocation5 + $0x30] sm:$0xff]
    %v379 = vld [vmem:[#allocation5 + $0x38] sm:$0xff]
    %v380 = vld [vmem:[#allocation5 + $0x40] sm:$0xff]
    %v381 = vld [vmem:[#allocation5 + $0x48] sm:$0xff]
    %v382 = vld [vmem:[#allocation5 + $0x50] sm:$0xff]
    %v383 = vld [vmem:[#allocation5 + $0x58] sm:$0xff]
    %v384 = vld [vmem:[#allocation5 + $0x60] sm:$0xff]
    %v385 = vld [vmem:[#allocation5 + $0x68] sm:$0xff]
    %v386 = vld [vmem:[#allocation5 + $0x70] sm:$0xff]
    %v387 = vld [vmem:[#allocation5 + $0x78] sm:$0xff]
    %v388 = vld [vmem:[%s6] sm:$0x1]
    %v390 = vlaneseq
    %v391 = vshrl.u32 %v390, 7
    %v392 = vsub.s32 0, %v391
    %v393 = vrot.slane %v388, %v392
    %395 = vmatprep.subr.mxu0 0.0
    %396 = vmatpush1.msra.mxu0 %v372
    %397 = vmatprep.subr.mxu0 0.0
    %398 = vmatpush1.msra.mxu0 %v373
    %399 = vmatprep.subr.mxu0 0.0
    %400 = vmatpush1.msra.mxu0 %v374
    %401 = vmatprep.subr.mxu0 0.0
    %402 = vmatpush1.msra.mxu0 %v375
    %403 = vmatprep.subr.mxu0 0.0
    %404 = vmatpush1.msra.mxu0 %v376
    %405 = vmatprep.subr.mxu0 0.0
    %406 = vmatpush1.msra.mxu0 %v377
    %407 = vmatprep.subr.mxu0 0.0
    %408 = vmatpush1.msra.mxu0 %v378
    %409 = vmatprep.subr.mxu0 0.0
    %410 = vmatpush1.msra.mxu0 %v379
    %411 = vmatprep.subr.mxu0 0.0
    %412 = vmatpush1.msra.mxu0 %v380
    %413 = vmatprep.subr.mxu0 0.0
    %414 = vmatpush1.msra.mxu0 %v381
    %415 = vmatprep.subr.mxu0 0.0
    %416 = vmatpush1.msra.mxu0 %v382
    %417 = vmatprep.subr.mxu0 0.0
    %418 = vmatpush1.msra.mxu0 %v383
    %419 = vmatprep.subr.mxu0 0.0
    %420 = vmatpush1.msra.mxu0 %v384
    %421 = vmatprep.subr.mxu0 0.0
    %422 = vmatpush1.msra.mxu0 %v385
    %423 = vmatprep.subr.mxu0 0.0
    %424 = vmatpush1.msra.mxu0 %v386
    %425 = vmatprep.subr.mxu0 0.0
    %426 = vmatpush1.msra.mxu0 %v387
    %427 = vmatprep.subr.mxu0 0.0
    %428 = vmatpush1.msra.mxu0 0.0
    %429 = vmatprep.subr.mxu0 0.0
    %430 = vmatpush1.msra.mxu0 0.0
    %431 = vmatprep.subr.mxu0 0.0
    %432 = vmatpush1.msra.mxu0 0.0
    %433 = vmatprep.subr.mxu0 0.0
    %434 = vmatpush1.msra.mxu0 0.0
    %435 = vmatprep.subr.mxu0 0.0
    %436 = vmatpush1.msra.mxu0 0.0
    %437 = vmatprep.subr.mxu0 0.0
    %438 = vmatpush1.msra.mxu0 0.0
    %439 = vmatprep.subr.mxu0 0.0
    %440 = vmatpush1.msra.mxu0 0.0
    %441 = vmatprep.subr.mxu0 0.0
    %442 = vmatpush1.msra.mxu0 0.0
    %443 = vmatprep.subr.mxu0 0.0
    %444 = vmatpush1.msra.mxu0 0.0
    %445 = vmatprep.subr.mxu0 0.0
    %446 = vmatpush1.msra.mxu0 0.0
    %447 = vmatprep.subr.mxu0 0.0
    %448 = vmatpush1.msra.mxu0 0.0
    %449 = vmatprep.subr.mxu0 0.0
    %450 = vmatpush1.msra.mxu0 0.0
    %451 = vmatprep.subr.mxu0 0.0
    %452 = vmatpush1.msra.mxu0 0.0
    %453 = vmatprep.subr.mxu0 0.0
    %454 = vmatpush1.msra.mxu0 0.0
    %455 = vmatprep.subr.mxu0 0.0
    %456 = vmatpush1.msra.mxu0 0.0
    %457 = vmatprep.subr.mxu0 0.0
    %458 = vmatpush1.msra.mxu0 0.0
    %459 = vmatprep.mubr.f32.mxu0 0.0
    %460 = vmatmul.mubr.f32.gmra.mrb[0].mxu0 %v368
    %v461 = vpop.f32.mrb[0].mxu0
    %v462 = vadd.f32 %v393, %v461
    %v463 = vpop.f32.mrb[0].mxu0
    %464 = vmatprep.mubr.f32.mxu0 0.0
    %465 = vmatmul.mubr.f32.gmra.mrb[0].mxu0 %v369
    %v466 = vpop.f32.mrb[0].mxu0
    %v467 = vadd.f32 %v393, %v466
    %v468 = vpop.f32.mrb[0].mxu0
    %469 = vmatprep.mubr.f32.mxu0 0.0
    %470 = vmatmul.mubr.f32.gmra.mrb[0].mxu0 %v370
    %v471 = vpop.f32.mrb[0].mxu0
    %v472 = vadd.f32 %v393, %v471
    %v473 = vpop.f32.mrb[0].mxu0
    %474 = vmatprep.mubr.f32.mxu0 0.0
    %475 = vmatmul.mubr.f32.gmra.mrb[0].mxu0 %v371
    %v476 = vpop.f32.mrb[0].mxu0
    %v477 = vadd.f32 %v393, %v476
    %v478 = vpop.f32.mrb[0].mxu0
    %479 = vdwg.mxu0
    %v480 = vmul.f32 %v462, %v76
    %v481 = vmul.f32 %v467, %v81
    %v482 = vmul.f32 %v472, %v86
    %v483 = vmul.f32 %v477, %v91
    %484 = vmatprep.subr.mxu0 0.0
    %485 = vmatpush1.msra.mxu0 %v480
    %486 = vmatprep.subr.mxu0 0.0
    %487 = vmatpush1.msra.mxu0 %v481
    %488 = vmatprep.subr.mxu0 0.0
    %489 = vmatpush1.msra.mxu0 0.0
    %490 = vmatprep.subr.mxu0 0.0
    %491 = vmatpush1.msra.mxu0 0.0
    %492 = vmatprep.subr.mxu0 0.0
    %493 = vmatpush1.msra.mxu0 0.0
    %494 = vmatprep.subr.mxu0 0.0
    %495 = vmatpush1.msra.mxu0 0.0
    %496 = vmatprep.subr.mxu0 0.0
    %497 = vmatpush1.msra.mxu0 0.0
    %498 = vmatprep.subr.mxu0 0.0
    %499 = vmatpush1.msra.mxu0 0.0
    %500 = vmatprep.subr.mxu0 0.0
    %501 = vmatpush1.msra.mxu0 0.0
    %502 = vmatprep.subr.mxu0 0.0
    %503 = vmatpush1.msra.mxu0 0.0
    %504 = vmatprep.subr.mxu0 0.0
    %505 = vmatpush1.msra.mxu0 0.0
    %506 = vmatprep.subr.mxu0 0.0
    %507 = vmatpush1.msra.mxu0 0.0
    %508 = vmatprep.subr.mxu0 0.0
    %509 = vmatpush1.msra.mxu0 0.0
    %510 = vmatprep.subr.mxu0 0.0
    %511 = vmatpush1.msra.mxu0 0.0
    %512 = vmatprep.subr.mxu0 0.0
    %513 = vmatpush1.msra.mxu0 0.0
    %514 = vmatprep.subr.mxu0 0.0
    %515 = vmatpush1.msra.mxu0 0.0
    %516 = vmatprep.subr.mxu0 0.0
    %517 = vmatpush1.msra.mxu0 0.0
    %518 = vmatprep.subr.mxu0 0.0
    %519 = vmatpush1.msra.mxu0 0.0
    %520 = vmatprep.subr.mxu0 0.0
    %521 = vmatpush1.msra.mxu0 0.0
    %522 = vmatprep.subr.mxu0 0.0
    %523 = vmatpush1.msra.mxu0 0.0
    %524 = vmatprep.subr.mxu0 0.0
    %525 = vmatpush1.msra.mxu0 0.0
    %526 = vmatprep.subr.mxu0 0.0
    %527 = vmatpush1.msra.mxu0 0.0
    %528 = vmatprep.subr.mxu0 0.0
    %529 = vmatpush1.msra.mxu0 0.0
    %530 = vmatprep.subr.mxu0 0.0
    %531 = vmatpush1.msra.mxu0 0.0
    %532 = vmatprep.subr.mxu0 0.0
    %533 = vmatpush1.msra.mxu0 0.0
    %534 = vmatprep.subr.mxu0 0.0
    %535 = vmatpush1.msra.mxu0 0.0
    %536 = vmatprep.subr.mxu0 0.0
    %537 = vmatpush1.msra.mxu0 0.0
    %538 = vmatprep.subr.mxu0 0.0
    %539 = vmatpush1.msra.mxu0 0.0
    %540 = vmatprep.subr.mxu0 0.0
    %541 = vmatpush1.msra.mxu0 0.0
    %542 = vmatprep.subr.mxu0 0.0
    %543 = vmatpush1.msra.mxu0 0.0
    %544 = vmatprep.subr.mxu0 0.0
    %545 = vmatpush1.msra.mxu0 0.0
    %546 = vmatprep.subr.mxu0 0.0
    %547 = vmatpush1.msra.mxu0 0.0
    %548 = vmatprep.mubr.f32.mxu0 0.0
    %549 = vmatmul.mubr.f32.gmra.mrb[0].mxu0 %v95
    %v550 = vpop.f32.mrb[0].mxu0
    %v551 = vadd.f32 0.0, %v550
    %v552 = vpop.f32.mrb[0].mxu0
    %553 = vmatprep.mubr.f32.mxu0 0.0
    %554 = vmatmul.mubr.f32.gmra.mrb[0].mxu0 %v98
    %v555 = vpop.f32.mrb[0].mxu0
    %v556 = vadd.f32 0.0, %v555
    %v557 = vpop.f32.mrb[0].mxu0
    %558 = vdwg.mxu0
    %559 = vmatprep.subr.mxu0 0.0
    %560 = vmatpush1.msra.mxu0 %v482
    %561 = vmatprep.subr.mxu0 0.0
    %562 = vmatpush1.msra.mxu0 %v483
    %563 = vmatprep.subr.mxu0 0.0
    %564 = vmatpush1.msra.mxu0 0.0
    %565 = vmatprep.subr.mxu0 0.0
    %566 = vmatpush1.msra.mxu0 0.0
    %567 = vmatprep.subr.mxu0 0.0
    %568 = vmatpush1.msra.mxu0 0.0
    %569 = vmatprep.subr.mxu0 0.0
    %570 = vmatpush1.msra.mxu0 0.0
    %571 = vmatprep.subr.mxu0 0.0
    %572 = vmatpush1.msra.mxu0 0.0
    %573 = vmatprep.subr.mxu0 0.0
    %574 = vmatpush1.msra.mxu0 0.0
    %575 = vmatprep.subr.mxu0 0.0
    %576 = vmatpush1.msra.mxu0 0.0
    %577 = vmatprep.subr.mxu0 0.0
    %578 = vmatpush1.msra.mxu0 0.0
    %579 = vmatprep.subr.mxu0 0.0
    %580 = vmatpush1.msra.mxu0 0.0
    %581 = vmatprep.subr.mxu0 0.0
    %582 = vmatpush1.msra.mxu0 0.0
    %583 = vmatprep.subr.mxu0 0.0
    %584 = vmatpush1.msra.mxu0 0.0
    %585 = vmatprep.subr.mxu0 0.0
    %586 = vmatpush1.msra.mxu0 0.0
    %587 = vmatprep.subr.mxu0 0.0
    %588 = vmatpush1.msra.mxu0 0.0
    %589 = vmatprep.subr.mxu0 0.0
    %590 = vmatpush1.msra.mxu0 0.0
    %591 = vmatprep.subr.mxu0 0.0
    %592 = vmatpush1.msra.mxu0 0.0
    %593 = vmatprep.subr.mxu0 0.0
    %594 = vmatpush1.msra.mxu0 0.0
    %595 = vmatprep.subr.mxu0 0.0
    %596 = vmatpush1.msra.mxu0 0.0
    %597 = vmatprep.subr.mxu0 0.0
    %598 = vmatpush1.msra.mxu0 0.0
    %599 = vmatprep.subr.mxu0 0.0
    %600 = vmatpush1.msra.mxu0 0.0
    %601 = vmatprep.subr.mxu0 0.0
    %602 = vmatpush1.msra.mxu0 0.0
    %603 = vmatprep.subr.mxu0 0.0
    %604 = vmatpush1.msra.mxu0 0.0
    %605 = vmatprep.subr.mxu0 0.0
    %606 = vmatpush1.msra.mxu0 0.0
    %607 = vmatprep.subr.mxu0 0.0
    %608 = vmatpush1.msra.mxu0 0.0
    %609 = vmatprep.subr.mxu0 0.0
    %610 = vmatpush1.msra.mxu0 0.0
    %611 = vmatprep.subr.mxu0 0.0
    %612 = vmatpush1.msra.mxu0 0.0
    %613 = vmatprep.subr.mxu0 0.0
    %614 = vmatpush1.msra.mxu0 0.0
    %615 = vmatprep.subr.mxu0 0.0
    %616 = vmatpush1.msra.mxu0 0.0
    %617 = vmatprep.subr.mxu0 0.0
    %618 = vmatpush1.msra.mxu0 0.0
    %619 = vmatprep.subr.mxu0 0.0
    %620 = vmatpush1.msra.mxu0 0.0
    %621 = vmatprep.subr.mxu0 0.0
    %622 = vmatpush1.msra.mxu0 0.0
    %623 = vmatprep.mubr.f32.mxu0 0.0
    %624 = vmatmul.mubr.f32.gmra.mrb[0].mxu0 %v176
    %v625 = vpop.f32.mrb[0].mxu0
    %v626 = vadd.f32 0.0, %v625
    %v627 = vpop.f32.mrb[0].mxu0
    %628 = vmatprep.mubr.f32.mxu0 0.0
    %629 = vmatmul.mubr.f32.gmra.mrb[0].mxu0 %v179
    %v630 = vpop.f32.mrb[0].mxu0
    %v631 = vadd.f32 0.0, %v630
    %v632 = vpop.f32.mrb[0].mxu0
    %633 = vdwg.mxu0
    %v634 = vadd.f32 %v480, %v551
    %v635 = vadd.f32 %v481, %v556
    %v636 = vadd.f32 %v482, %v626
    %v637 = vadd.f32 %v483, %v631
    %s638 = scalar_lea.vmem [#allocation2], 128
    %v639 = vld [vmem:[%s638] sm:$0xff]
    %v640 = vld [vmem:[%s638 + $0x8] sm:$0xff]
    %v641 = vld [vmem:[%s638 + $0x10] sm:$0xff]
    %v642 = vld [vmem:[%s638 + $0x18] sm:$0xff]
    %v643 = vld [vmem:[%s638 + $0x20] sm:$0xff]
    %v644 = vld [vmem:[%s638 + $0x28] sm:$0xff]
    %v645 = vld [vmem:[%s638 + $0x30] sm:$0xff]
    %v646 = vld [vmem:[%s638 + $0x38] sm:$0xff]
    %v647 = vld [vmem:[%s638 + $0x40] sm:$0xff]
    %v648 = vld [vmem:[%s638 + $0x48] sm:$0xff]
    %v649 = vld [vmem:[%s638 + $0x50] sm:$0xff]
    %v650 = vld [vmem:[%s638 + $0x58] sm:$0xff]
    %v651 = vld [vmem:[%s638 + $0x60] sm:$0xff]
    %v652 = vld [vmem:[%s638 + $0x68] sm:$0xff]
    %v653 = vld [vmem:[%s638 + $0x70] sm:$0xff]
    %v654 = vld [vmem:[%s638 + $0x78] sm:$0xff]
    %s655 = scalar_lea.vmem %s4, 1
    %v656 = vld [vmem:[%s655] sm:$0x1]
    %v658 = vlaneseq
    %v659 = vshrl.u32 %v658, 7
    %v660 = vsub.s32 0, %v659
    %v661 = vrot.slane %v656, %v660
    %663 = vmatprep.subr.mxu0 0.0
    %664 = vmatpush1.msra.mxu0 %v639
    %665 = vmatprep.subr.mxu0 0.0
    %666 = vmatpush1.msra.mxu0 %v640
    %667 = vmatprep.subr.mxu0 0.0
    %668 = vmatpush1.msra.mxu0 %v641
    %669 = vmatprep.subr.mxu0 0.0
    %670 = vmatpush1.msra.mxu0 %v642
    %671 = vmatprep.subr.mxu0 0.0
    %672 = vmatpush1.msra.mxu0 %v643
    %673 = vmatprep.subr.mxu0 0.0
    %674 = vmatpush1.msra.mxu0 %v644
    %675 = vmatprep.subr.mxu0 0.0
    %676 = vmatpush1.msra.mxu0 %v645
    %677 = vmatprep.subr.mxu0 0.0
    %678 = vmatpush1.msra.mxu0 %v646
    %679 = vmatprep.subr.mxu0 0.0
    %680 = vmatpush1.msra.mxu0 %v647
    %681 = vmatprep.subr.mxu0 0.0
    %682 = vmatpush1.msra.mxu0 %v648
    %683 = vmatprep.subr.mxu0 0.0
    %684 = vmatpush1.msra.mxu0 %v649
    %685 = vmatprep.subr.mxu0 0.0
    %686 = vmatpush1.msra.mxu0 %v650
    %687 = vmatprep.subr.mxu0 0.0
    %688 = vmatpush1.msra.mxu0 %v651
    %689 = vmatprep.subr.mxu0 0.0
    %690 = vmatpush1.msra.mxu0 %v652
    %691 = vmatprep.subr.mxu0 0.0
    %692 = vmatpush1.msra.mxu0 %v653
    %693 = vmatprep.subr.mxu0 0.0
    %694 = vmatpush1.msra.mxu0 %v654
    %695 = vmatprep.subr.mxu0 0.0
    %696 = vmatpush1.msra.mxu0 0.0
    %697 = vmatprep.subr.mxu0 0.0
    %698 = vmatpush1.msra.mxu0 0.0
    %699 = vmatprep.subr.mxu0 0.0
    %700 = vmatpush1.msra.mxu0 0.0
    %701 = vmatprep.subr.mxu0 0.0
    %702 = vmatpush1.msra.mxu0 0.0
    %703 = vmatprep.subr.mxu0 0.0
    %704 = vmatpush1.msra.mxu0 0.0
    %705 = vmatprep.subr.mxu0 0.0
    %706 = vmatpush1.msra.mxu0 0.0
    %707 = vmatprep.subr.mxu0 0.0
    %708 = vmatpush1.msra.mxu0 0.0
    %709 = vmatprep.subr.mxu0 0.0
    %710 = vmatpush1.msra.mxu0 0.0
    %711 = vmatprep.subr.mxu0 0.0
    %712 = vmatpush1.msra.mxu0 0.0
    %713 = vmatprep.subr.mxu0 0.0
    %714 = vmatpush1.msra.mxu0 0.0
    %715 = vmatprep.subr.mxu0 0.0
    %716 = vmatpush1.msra.mxu0 0.0
    %717 = vmatprep.subr.mxu0 0.0
    %718 = vmatpush1.msra.mxu0 0.0
    %719 = vmatprep.subr.mxu0 0.0
    %720 = vmatpush1.msra.mxu0 0.0
    %721 = vmatprep.subr.mxu0 0.0
    %722 = vmatpush1.msra.mxu0 0.0
    %723 = vmatprep.subr.mxu0 0.0
    %724 = vmatpush1.msra.mxu0 0.0
    %725 = vmatprep.subr.mxu0 0.0
    %726 = vmatpush1.msra.mxu0 0.0
    %727 = vmatprep.mubr.f32.mxu0 0.0
    %728 = vmatmul.mubr.f32.gmra.mrb[0].mxu0 %v634
    %v729 = vpop.f32.mrb[0].mxu0
    %v730 = vadd.f32 %v661, %v729
    %v731 = vpop.f32.mrb[0].mxu0
    %732 = vmatprep.mubr.f32.mxu0 0.0
    %733 = vmatmul.mubr.f32.gmra.mrb[0].mxu0 %v635
    %v734 = vpop.f32.mrb[0].mxu0
    %v735 = vadd.f32 %v661, %v734
    %v736 = vpop.f32.mrb[0].mxu0
    %737 = vmatprep.mubr.f32.mxu0 0.0
    %738 = vmatmul.mubr.f32.gmra.mrb[0].mxu0 %v636
    %v739 = vpop.f32.mrb[0].mxu0
    %v740 = vadd.f32 %v661, %v739
    %v741 = vpop.f32.mrb[0].mxu0
    %742 = vmatprep.mubr.f32.mxu0 0.0
    %743 = vmatmul.mubr.f32.gmra.mrb[0].mxu0 %v637
    %v744 = vpop.f32.mrb[0].mxu0
    %v745 = vadd.f32 %v661, %v744
    %v746 = vpop.f32.mrb[0].mxu0
    %747 = vdwg.mxu0
    %v748 = vmax.f32 %v730, 0.0
    %v749 = vmax.f32 %v735, 0.0
    %v750 = vmax.f32 %v740, 0.0
    %v751 = vmax.f32 %v745, 0.0
    %s752 = scalar_lea.vmem [#allocation5], 128
    %v753 = vld [vmem:[%s752] sm:$0xff]
    %v754 = vld [vmem:[%s752 + $0x8] sm:$0xff]
    %v755 = vld [vmem:[%s752 + $0x10] sm:$0xff]
    %v756 = vld [vmem:[%s752 + $0x18] sm:$0xff]
    %v757 = vld [vmem:[%s752 + $0x20] sm:$0xff]
    %v758 = vld [vmem:[%s752 + $0x28] sm:$0xff]
    %v759 = vld [vmem:[%s752 + $0x30] sm:$0xff]
    %v760 = vld [vmem:[%s752 + $0x38] sm:$0xff]
    %v761 = vld [vmem:[%s752 + $0x40] sm:$0xff]
    %v762 = vld [vmem:[%s752 + $0x48] sm:$0xff]
    %v763 = vld [vmem:[%s752 + $0x50] sm:$0xff]
    %v764 = vld [vmem:[%s752 + $0x58] sm:$0xff]
    %v765 = vld [vmem:[%s752 + $0x60] sm:$0xff]
    %v766 = vld [vmem:[%s752 + $0x68] sm:$0xff]
    %v767 = vld [vmem:[%s752 + $0x70] sm:$0xff]
    %v768 = vld [vmem:[%s752 + $0x78] sm:$0xff]
    %s769 = scalar_lea.vmem %s6, 1
    %v770 = vld [vmem:[%s769] sm:$0x1]
    %v772 = vlaneseq
    %v773 = vshrl.u32 %v772, 7
    %v774 = vsub.s32 0, %v773
    %v775 = vrot.slane %v770, %v774
    %777 = vmatprep.subr.mxu0 0.0
    %778 = vmatpush1.msra.mxu0 %v753
    %779 = vmatprep.subr.mxu0 0.0
    %780 = vmatpush1.msra.mxu0 %v754
    %781 = vmatprep.subr.mxu0 0.0
    %782 = vmatpush1.msra.mxu0 %v755
    %783 = vmatprep.subr.mxu0 0.0
    %784 = vmatpush1.msra.mxu0 %v756
    %785 = vmatprep.subr.mxu0 0.0
    %786 = vmatpush1.msra.mxu0 %v757
    %787 = vmatprep.subr.mxu0 0.0
    %788 = vmatpush1.msra.mxu0 %v758
    %789 = vmatprep.subr.mxu0 0.0
    %790 = vmatpush1.msra.mxu0 %v759
    %791 = vmatprep.subr.mxu0 0.0
    %792 = vmatpush1.msra.mxu0 %v760
    %793 = vmatprep.subr.mxu0 0.0
    %794 = vmatpush1.msra.mxu0 %v761
    %795 = vmatprep.subr.mxu0 0.0
    %796 = vmatpush1.msra.mxu0 %v762
    %797 = vmatprep.subr.mxu0 0.0
    %798 = vmatpush1.msra.mxu0 %v763
    %799 = vmatprep.subr.mxu0 0.0
    %800 = vmatpush1.msra.mxu0 %v764
    %801 = vmatprep.subr.mxu0 0.0
    %802 = vmatpush1.msra.mxu0 %v765
    %803 = vmatprep.subr.mxu0 0.0
    %804 = vmatpush1.msra.mxu0 %v766
    %805 = vmatprep.subr.mxu0 0.0
    %806 = vmatpush1.msra.mxu0 %v767
    %807 = vmatprep.subr.mxu0 0.0
    %808 = vmatpush1.msra.mxu0 %v768
    %809 = vmatprep.subr.mxu0 0.0
    %810 = vmatpush1.msra.mxu0 0.0
    %811 = vmatprep.subr.mxu0 0.0
    %812 = vmatpush1.msra.mxu0 0.0
    %813 = vmatprep.subr.mxu0 0.0
    %814 = vmatpush1.msra.mxu0 0.0
    %815 = vmatprep.subr.mxu0 0.0
    %816 = vmatpush1.msra.mxu0 0.0
    %817 = vmatprep.subr.mxu0 0.0
    %818 = vmatpush1.msra.mxu0 0.0
    %819 = vmatprep.subr.mxu0 0.0
    %820 = vmatpush1.msra.mxu0 0.0
    %821 = vmatprep.subr.mxu0 0.0
    %822 = vmatpush1.msra.mxu0 0.0
    %823 = vmatprep.subr.mxu0 0.0
    %824 = vmatpush1.msra.mxu0 0.0
    %825 = vmatprep.subr.mxu0 0.0
    %826 = vmatpush1.msra.mxu0 0.0
    %827 = vmatprep.subr.mxu0 0.0
    %828 = vmatpush1.msra.mxu0 0.0
    %829 = vmatprep.subr.mxu0 0.0
    %830 = vmatpush1.msra.mxu0 0.0
    %831 = vmatprep.subr.mxu0 0.0
    %832 = vmatpush1.msra.mxu0 0.0
    %833 = vmatprep.subr.mxu0 0.0
    %834 = vmatpush1.msra.mxu0 0.0
    %835 = vmatprep.subr.mxu0 0.0
    %836 = vmatpush1.msra.mxu0 0.0
    %837 = vmatprep.subr.mxu0 0.0
    %838 = vmatpush1.msra.mxu0 0.0
    %839 = vmatprep.subr.mxu0 0.0
    %840 = vmatpush1.msra.mxu0 0.0
    %841 = vmatprep.mubr.f32.mxu0 0.0
    %842 = vmatmul.mubr.f32.gmra.mrb[0].mxu0 %v748
    %v843 = vpop.f32.mrb[0].mxu0
    %v844 = vadd.f32 %v775, %v843
    %v845 = vpop.f32.mrb[0].mxu0
    %846 = vmatprep.mubr.f32.mxu0 0.0
    %847 = vmatmul.mubr.f32.gmra.mrb[0].mxu0 %v749
    %v848 = vpop.f32.mrb[0].mxu0
    %v849 = vadd.f32 %v775, %v848
    %v850 = vpop.f32.mrb[0].mxu0
    %851 = vmatprep.mubr.f32.mxu0 0.0
    %852 = vmatmul.mubr.f32.gmra.mrb[0].mxu0 %v750
    %v853 = vpop.f32.mrb[0].mxu0
    %v854 = vadd.f32 %v775, %v853
    %v855 = vpop.f32.mrb[0].mxu0
    %856 = vmatprep.mubr.f32.mxu0 0.0
    %857 = vmatmul.mubr.f32.gmra.mrb[0].mxu0 %v751
    %v858 = vpop.f32.mrb[0].mxu0
    %v859 = vadd.f32 %v775, %v858
    %v860 = vpop.f32.mrb[0].mxu0
    %861 = vdwg.mxu0
    %v862 = vmul.f32 %v844, %v76
    %v863 = vmul.f32 %v849, %v81
    %v864 = vmul.f32 %v854, %v86
    %v865 = vmul.f32 %v859, %v91
    %v866 = vmax.f32 %v862, %v863
    %v867 = vrot.slane %v866, 4
    %v868 = vmax.f32 %v866, %v867
    %v869 = vrot.slane %v868, 2
    %v870 = vmax.f32 %v868, %v869
    %v871 = vrot.slane %v870, 1
    %v872 = vmax.f32 %v870, %v871
    %v873 = vmax.f32 %v864, %v865
    %v874 = vrot.slane %v873, 4
    %v875 = vmax.f32 %v873, %v874
    %v876 = vrot.slane %v875, 2
    %v877 = vmax.f32 %v875, %v876
    %v878 = vrot.slane %v877, 1
    %v879 = vmax.f32 %v877, %v878
    %vm880 = vcmask 1040384
    %v881 = vsel %vm880, %v872, %v879
    %v882 = vld [vmem:[%s7] sm:$0xff]
    %v883 = vld [vmem:[%s7 + $0x8] sm:$0xff]
    %v884 = vld [vmem:[%s7 + $0x10] sm:$0xff]
    %v885 = vld [vmem:[%s7 + $0x18] sm:$0xff]
    %v886 = vld [vmem:[%s7 + $0x20] sm:$0xff]
    %v887 = vld [vmem:[%s7 + $0x28] sm:$0xff]
    %v888 = vld [vmem:[%s7 + $0x30] sm:$0xff]
    %v889 = vld [vmem:[%s7 + $0x38] sm:$0xff]
    %v890 = vld [vmem:[%s7 + $0x40] sm:$0xff]
    %v891 = vld [vmem:[%s7 + $0x48] sm:$0xff]
    %v892 = vld [vmem:[%s7 + $0x50] sm:$0xff]
    %v893 = vld [vmem:[%s7 + $0x58] sm:$0xff]
    %v894 = vld [vmem:[%s7 + $0x60] sm:$0xff]
    %v895 = vld [vmem:[%s7 + $0x68] sm:$0xff]
    %v896 = vld [vmem:[%s7 + $0x70] sm:$0xff]
    %v897 = vld [vmem:[%s7 + $0x78] sm:$0xff]
    %v898 = vld [vmem:[%s8] sm:$0x1]
    %v900 = vlaneseq
    %v901 = vshrl.u32 %v900, 7
    %v902 = vsub.s32 0, %v901
    %v903 = vrot.slane %v898, %v902
    %905 = vmatprep.subr.mxu0 0.0
    %906 = vmatpush1.msra.mxu0 %v882
    %907 = vmatprep.subr.mxu0 0.0
    %908 = vmatpush1.msra.mxu0 %v883
    %909 = vmatprep.subr.mxu0 0.0
    %910 = vmatpush1.msra.mxu0 %v884
    %911 = vmatprep.subr.mxu0 0.0
    %912 = vmatpush1.msra.mxu0 %v885
    %913 = vmatprep.subr.mxu0 0.0
    %914 = vmatpush1.msra.mxu0 %v886
    %915 = vmatprep.subr.mxu0 0.0
    %916 = vmatpush1.msra.mxu0 %v887
    %917 = vmatprep.subr.mxu0 0.0
    %918 = vmatpush1.msra.mxu0 %v888
    %919 = vmatprep.subr.mxu0 0.0
    %920 = vmatpush1.msra.mxu0 %v889
    %921 = vmatprep.subr.mxu0 0.0
    %922 = vmatpush1.msra.mxu0 %v890
    %923 = vmatprep.subr.mxu0 0.0
    %924 = vmatpush1.msra.mxu0 %v891
    %925 = vmatprep.subr.mxu0 0.0
    %926 = vmatpush1.msra.mxu0 %v892
    %927 = vmatprep.subr.mxu0 0.0
    %928 = vmatpush1.msra.mxu0 %v893
    %929 = vmatprep.subr.mxu0 0.0
    %930 = vmatpush1.msra.mxu0 %v894
    %931 = vmatprep.subr.mxu0 0.0
    %932 = vmatpush1.msra.mxu0 %v895
    %933 = vmatprep.subr.mxu0 0.0
    %934 = vmatpush1.msra.mxu0 %v896
    %935 = vmatprep.subr.mxu0 0.0
    %936 = vmatpush1.msra.mxu0 %v897
    %937 = vmatprep.subr.mxu0 0.0
    %938 = vmatpush1.msra.mxu0 0.0
    %939 = vmatprep.subr.mxu0 0.0
    %940 = vmatpush1.msra.mxu0 0.0
    %941 = vmatprep.subr.mxu0 0.0
    %942 = vmatpush1.msra.mxu0 0.0
    %943 = vmatprep.subr.mxu0 0.0
    %944 = vmatpush1.msra.mxu0 0.0
    %945 = vmatprep.subr.mxu0 0.0
    %946 = vmatpush1.msra.mxu0 0.0
    %947 = vmatprep.subr.mxu0 0.0
    %948 = vmatpush1.msra.mxu0 0.0
    %949 = vmatprep.subr.mxu0 0.0
    %950 = vmatpush1.msra.mxu0 0.0
    %951 = vmatprep.subr.mxu0 0.0
    %952 = vmatpush1.msra.mxu0 0.0
    %953 = vmatprep.subr.mxu0 0.0
    %954 = vmatpush1.msra.mxu0 0.0
    %955 = vmatprep.subr.mxu0 0.0
    %956 = vmatpush1.msra.mxu0 0.0
    %957 = vmatprep.subr.mxu0 0.0
    %958 = vmatpush1.msra.mxu0 0.0
    %959 = vmatprep.subr.mxu0 0.0
    %960 = vmatpush1.msra.mxu0 0.0
    %961 = vmatprep.subr.mxu0 0.0
    %962 = vmatpush1.msra.mxu0 0.0
    %963 = vmatprep.subr.mxu0 0.0
    %964 = vmatpush1.msra.mxu0 0.0
    %965 = vmatprep.subr.mxu0 0.0
    %966 = vmatpush1.msra.mxu0 0.0
    %967 = vmatprep.subr.mxu0 0.0
    %968 = vmatpush1.msra.mxu0 0.0
    %969 = vmatprep.mubr.f32.mxu0 0.0
    %970 = vmatmul.mubr.f32.gmra.mrb[0].mxu0 %v881
    %v971 = vpop.f32.mrb[0].mxu0
    %v972 = vadd.f32 %v903, %v971
    %v973 = vpop.f32.mrb[0].mxu0
    %974 = vdwg.mxu0
    %975 = vst [vmem:[#allocation7] sm:$0x3] %v972
    // Predicated region
    $region46: #{gin_forward.1} parent=1 // pred_check
      _
    $region47: #{gin_forward.1} parent=1 // pred_check_branch
      %977 = sbr.rel (0) target = $region49
    $region48: #{gin_forward.1} parent=1 // pred_region
      %s979 = ssub.s32 32, 32
      %980 = vsyncadd [#allocation4], %s979
      %s982 = sshll.u32 [#allocation7], 4
      %s983 = int_to_ptr.vmem [resolvable:$true] %s982
      %985 = dma.vmem_to_hbm [thread:$0]  %s983, 32, %s9, [#allocation4]
    $region49: #{gin_forward.1} parent=1 // pred_fallthru
      _
    // Predicated region
    $region50: #{gin_forward.1} parent=1 // pred_check
      _
    $region51: #{gin_forward.1} parent=1 // pred_check_branch
      %987 = sbr.rel (0) target = $region53
    $region52: #{gin_forward.1} parent=1 // pred_region
      %988 = dma.done [#allocation4], 32
    $region53: #{gin_forward.1} parent=1 // pred_fallthru
      _
    %989 = vsyncpa [#allocation3], 1
    %990 = vsyncpa [#allocation6], 1
    %991 = vsyncpa [#allocation4], 1

</llo_original>
